<compile_context>
chip_gen: v7x
topology: tpu7x:2x2x1
jax: 0.10.0
libtpu: 0.0.40
codegen_flags: <defaults>
</compile_context>

<pallas_src>
import functools

import jax
import jax.numpy as jnp
from jax.experimental import pallas as pl
from jax.experimental.pallas import tpu as pltpu


# --------------------------------------------------------------------------- #
# Chip-generation knobs
# --------------------------------------------------------------------------- #
def _generation_params():
    """Generation-gated knobs: matmul-operand dtype, per-step input-block
    budget, and the scoped-VMEM limit.  bf16 math only on v6e/v7x (v5e has no
    bf16 VPU and we stay f32-exact there); 64 MiB VMEM limit on v5e/v6e
    (128 MiB physical), 32 MiB on v7x (64 MiB physical)."""
    try:
        kind = jax.devices()[0].device_kind.lower()
    except Exception:
        kind = ""
    if "v7" in kind:
        return dict(compute_dtype=jnp.bfloat16, tile_budget=1 << 20, vmem_limit=32 << 20)
    if "v6" in kind:
        return dict(compute_dtype=jnp.bfloat16, tile_budget=2 << 20, vmem_limit=64 << 20)
    if "v5" in kind:
        return dict(compute_dtype=jnp.float32, tile_budget=2 << 20, vmem_limit=64 << 20)
    return dict(compute_dtype=jnp.float32, tile_budget=1 << 20, vmem_limit=32 << 20)


# --------------------------------------------------------------------------- #
# One-time parameter folding (per parameter set, NOT per forward call)
# --------------------------------------------------------------------------- #
def prepare_poscnn_params(weight, bias, H, W, compute_dtype=None):
    """Fold the depthwise 3x3 conv, its zero padding along W, and the '+ x'
    residual into three (W*C, W*C) banded matrices (one per kernel row) plus a
    bias row, in the folded (w, c) -> p = w*C + c index space.

    weight : (C, 1, 3, 3)  PyTorch depthwise Conv2d weight layout
    bias   : (C,)
    """
    C = int(weight.shape[0])
    WC = W * C
    if WC > 1024:
        # TODO(synk): large folded width (W*C > 1024, e.g. production embed
        # dims with C % 128 == 0) needs the channels-last path (C on lanes,
        # C-tiled grid, compact per-channel weights + sublane shifts) instead
        # of the banded-matmul formulation used here.
        raise NotImplementedError("W*C > 1024 not supported by this variant.")
    if compute_dtype is None:
        compute_dtype = _generation_params()["compute_dtype"]

    wt = weight[:, 0, :, :].astype(jnp.float32)                 # (C, 3, 3)
    q = jnp.arange(WC)
    wq, cq = q // C, q % C                                      # column / channel of index
    same_c = cq[:, None] == cq[None, :]                         # depthwise: channel preserved
    w_diff = wq[None, :] - wq[:, None]                          # w_target - w_source

    def band(dh):
        # x[h+dh-1, w+dw-1, c] feeds out[h, w, c]  =>  w_tgt - w_src == 1 - dw.
        a = jnp.zeros((WC, WC), jnp.float32)
        for dw in range(3):
            mask = same_c & (w_diff == (1 - dw))
            a = a + jnp.where(mask, wt[cq, dh, dw][:, None], 0.0)
        return a

    a_up, a_mid, a_down = band(0), band(1), band(2)
    a_mid = a_mid + jnp.eye(WC, dtype=jnp.float32)              # '+ x' residual
    A = jnp.stack([a_up, a_mid, a_down]).astype(compute_dtype)  # (3, WC, WC)
    bvec = bias.astype(jnp.float32)[cq].reshape(1, WC)          # bias per folded column
    return A, bvec


# --------------------------------------------------------------------------- #
# Kernel
# --------------------------------------------------------------------------- #
def _poscnn_kernel(*refs, compute_dtype, has_halo):
    """One (batch [, H-tile]) step: depthwise 3x3 conv + bias + residual.

    has_halo == True  refs: x(1,TH,WC), top(1,8,WC), bot(1,8,WC),
                            A(3,WC,WC), b(1,WC), o(1,TH,WC), scratch(TH+2,WC)
    has_halo == False refs: x(1,H,WC), A(3,WC,WC), b(1,WC), o(1,H,WC),
                            scratch(H+2,WC)
    """
    if has_halo:
        x_ref, top_ref, bot_ref, a_ref, b_ref, o_ref, xs_ref = refs
    else:
        x_ref, a_ref, b_ref, o_ref, xs_ref = refs

    th = o_ref.shape[1]
    wc = o_ref.shape[2]

    if has_halo:
        i = pl.program_id(1)
        nt = pl.num_programs(1)
        # Halo blocks are 8-row groups (block alignment); the needed row is the
        # last row of the group above / first row of the group below.  The
        # index maps clamp at the image border, so mask those rows to zero to
        # reproduce the conv's zero padding.
        top = jnp.where(i > 0, top_ref[0, 7:8, :], 0.0)
        bot = jnp.where(i < nt - 1, bot_ref[0, 0:1, :], 0.0)
    else:
        top = jnp.zeros((1, wc), dtype=x_ref.dtype)
        bot = jnp.zeros((1, wc), dtype=x_ref.dtype)

    # Stage [row-above ; tile ; row-below] once; the three vertically shifted
    # row windows are plain static-offset reads of this scratch (no concat /
    # full-tile temporaries).
    xs_ref[0:1, :] = top
    xs_ref[1:th + 1, :] = x_ref[0]
    xs_ref[th + 1:th + 2, :] = bot

    # Depthwise 3x3 conv + residual as three banded matmuls on the (otherwise
    # idle) MXU.  Horizontal taps, W-edge zero padding and the '+x' residual
    # all live inside the band matrices; accumulation stays in f32.
    acc = jnp.dot(xs_ref[0:th, :].astype(compute_dtype), a_ref[0],
                  preferred_element_type=jnp.float32)
    acc = acc + jnp.dot(xs_ref[1:th + 1, :].astype(compute_dtype), a_ref[1],
                        preferred_element_type=jnp.float32)
    acc = acc + jnp.dot(xs_ref[2:th + 2, :].astype(compute_dtype), a_ref[2],
                        preferred_element_type=jnp.float32)
    acc = acc + b_ref[...]                      # bias in f32
    o_ref[0] = acc.astype(o_ref.dtype)


# --------------------------------------------------------------------------- #
# Tiling choice
# --------------------------------------------------------------------------- #
def _choose_tile_h(H, WC, itemsize, budget, B):
    """Largest 8-aligned divisor of H whose input block stays under `budget`
    (double buffering / staging scratch / f32 accumulator covered by headroom).
    When B >= 2 the batch grid axis already provides >= 2 parallel steps for
    megacore, so we never force an H split just for parallelism; for B == 1 we
    only keep the whole image as a single block when it is tiny."""
    row_bytes = WC * itemsize
    full_fits = H * row_bytes <= budget
    cands = [d for d in range(8, H, 8) if H % d == 0 and d * row_bytes <= budget]
    if B >= 2 or not cands:
        return H if (full_fits or not cands) else max(cands)
    if full_fits and H * row_bytes <= 256 * 1024:   # tiny: single block anyway
        return H
    return max(cands)


# --------------------------------------------------------------------------- #
# Forward wrapper
# --------------------------------------------------------------------------- #
def poscnn_forward(x, params, H, W, s=1, *, tile_h=None):
    """PosCNN.forward for s == 1.

    x      : (B, N, C) with N == H * W
    params : output of prepare_poscnn_params(weight, bias, H, W)
    returns: (B, N, C)
    """
    if s != 1:
        # TODO(synk): strided (s > 1) PosCNN path (no residual, downsampled
        # output) is not implemented; the module default is s = 1.
        raise NotImplementedError("Only s=1 is implemented.")

    A, bvec = params
    compute_dtype = A.dtype
    B, N, C = x.shape
    assert N == H * W
    WC = W * C
    assert A.shape == (3, WC, WC) and bvec.shape == (1, WC)

    gen = _generation_params()
    th = tile_h if tile_h is not None else _choose_tile_h(
        H, WC, x.dtype.itemsize, gen["tile_budget"], B)
    assert H % th == 0 and (th == H or th % 8 == 0), (H, th)
    nt = H // th
    has_halo = nt > 1

    # (B, N, C) -> (B, H, W*C): element-order preserving (free) reshape; the
    # last dim of every block below is therefore W*C (lane-dense), not C.
    x_f = x.reshape(B, H, WC)

    kernel = functools.partial(_poscnn_kernel,
                               compute_dtype=compute_dtype, has_halo=has_halo)

    if has_halo:
        tb = th // 8                        # 8-row halo groups per tile
        grid = (B, nt)
        in_specs = [
            pl.BlockSpec((1, th, WC), lambda b, i: (b, i, 0)),
            # 8-row group containing the row just above / below the tile
            # (clamped at the border; masked to zero inside the kernel).
            pl.BlockSpec((1, 8, WC),
                         lambda b, i: (b, jnp.maximum(i * tb - 1, 0), 0)),
            pl.BlockSpec((1, 8, WC),
                         lambda b, i: (b, jnp.minimum((i + 1) * tb, H // 8 - 1), 0)),
            # folded band matrices / bias (constant across the grid; small, so
            # the default double buffer is negligible -- pl.Buffered(1) would
            # be the knob if they ever grow large).
            pl.BlockSpec((3, WC, WC), lambda b, i: (0, 0, 0)),
            pl.BlockSpec((1, WC), lambda b, i: (0, 0)),
        ]
        out_spec = pl.BlockSpec((1, th, WC), lambda b, i: (b, i, 0))
        operands = (x_f, x_f, x_f, A, bvec)
        dims = ("parallel", "parallel")
    else:
        # Tiny / single-tile problems: one block per batch image, no halo DMAs.
        grid = (B,)
        in_specs = [
            pl.BlockSpec((1, H, WC), lambda b: (b, 0, 0)),
            pl.BlockSpec((3, WC, WC), lambda b: (0, 0, 0)),
            pl.BlockSpec((1, WC), lambda b: (0, 0)),
        ]
        out_spec = pl.BlockSpec((1, H, WC), lambda b: (b, 0, 0))
        operands = (x_f, A, bvec)
        dims = ("parallel",)

    out = pl.pallas_call(
        kernel,
        out_shape=jax.ShapeDtypeStruct((B, H, WC), x.dtype),
        grid_spec=pltpu.PrefetchScalarGridSpec(
            num_scalar_prefetch=0,
            grid=grid,
            in_specs=in_specs,
            out_specs=out_spec,
            scratch_shapes=[pltpu.VMEM((th + 2, WC), x.dtype)],
        ),
        compiler_params=pltpu.CompilerParams(
            dimension_semantics=dims,
            vmem_limit_bytes=gen["vmem_limit"],
        ),
    )(*operands)

    return out.reshape(B, N, C)


# --------------------------------------------------------------------------- #
# Pure-JAX reference (for validation only)
# --------------------------------------------------------------------------- #
def _reference_forward(x, weight, bias, H, W):
    B, N, C = x.shape
    xh = x.reshape(B, H, W, C)
    xp = jnp.pad(xh, ((0, 0), (1, 1), (1, 1), (0, 0)))
    w_hwc = jnp.transpose(weight[:, 0, :, :], (1, 2, 0))        # (3, 3, C)
    acc = jnp.zeros((B, H, W, C), jnp.float32)
    for dh in range(3):
        for dw in range(3):
            acc = acc + xp[:, dh:dh + H, dw:dw + W, :] * w_hwc[dh, dw, :]
    acc = acc + bias.reshape(1, 1, 1, C) + xh
    return acc.reshape(B, N, C)


if __name__ == "__main__":
    # Small PosCNN-consistent shapes: B=2, C=embed_dim=4, H=W=16, N=256.
    B, C, H, W = 2, 4, 16, 16
    N = H * W

    key = jax.random.PRNGKey(0)
    kx, kw, kb = jax.random.split(key, 3)

    x = jax.random.normal(kx, (B, N, C), dtype=jnp.float32)
    # nn.Conv2d(C, C, 3, 1, 1, bias=True, groups=C) parameter shapes.
    weight = 0.1 * jax.random.normal(kw, (C, 1, 3, 3), dtype=jnp.float32)
    bias = 0.1 * jax.random.normal(kb, (C,), dtype=jnp.float32)

    # Parameter folding happens once per parameter set.
    params = prepare_poscnn_params(weight, bias, H, W)
    compute_dtype = params[0].dtype

    ref = _reference_forward(x, weight, bias, H, W)
    if compute_dtype == jnp.float32:
        atol, rtol = 1e-4, 1e-4
    else:  # bf16 matmul operands on v6e/v7x
        atol, rtol = 7.5e-2, 5e-2

    # 1) Auto-chosen tiling: whole image per step (single-block, no-halo path).
    out = jax.block_until_ready(poscnn_forward(x, params, H, W, s=1))
    assert out.shape == (B, N, C)
    err = float(jnp.max(jnp.abs(out - ref)))
    assert jnp.allclose(out, ref, atol=atol, rtol=rtol), f"no-halo max|diff|={err}"

    # 2) Forced H tiling to also exercise the multi-tile (halo) path on TPU.
    out2 = jax.block_until_ready(poscnn_forward(x, params, H, W, s=1, tile_h=8))
    err2 = float(jnp.max(jnp.abs(out2 - ref)))
    assert jnp.allclose(out2, ref, atol=atol, rtol=rtol), f"halo max|diff|={err2}"

    print("KERNEL_OK")
</pallas_src>

<mosaic_0001>
module attributes {stable_mosaic.version = 11 : i64} {
  func.func @_poscnn_kernel(%arg0: i32, %arg1: memref<1x16x64xf32, #tpu.memory_space<vmem>>, %arg2: memref<3x64x64xf32, #tpu.memory_space<vmem>>, %arg3: memref<1x64xf32, #tpu.memory_space<vmem>>, %arg4: memref<1x16x64xf32, #tpu.memory_space<vmem>>, %arg5: memref<18x64xf32, #tpu.memory_space<vmem>>) attributes {dimension_semantics = [#tpu.dimension_semantics<parallel>], iteration_bounds = array<i64: 2>, scalar_prefetch = 0 : i64, scratch_operands = 1 : i64, tpu.core_type = #tpu.core_type<tc>, window_params = [{transform_indices = @transform_0, window_bounds = array<i64: 1, 16, 64>}, {pipeline_mode = #tpu.pipeline_mode<synchronous>, transform_indices = @transform_1, window_bounds = array<i64: 3, 64, 64>}, {pipeline_mode = #tpu.pipeline_mode<synchronous>, transform_indices = @transform_2, window_bounds = array<i64: 1, 64>}, {transform_indices = @transform_3, window_bounds = array<i64: 1, 16, 64>}]} {
    %cst = arith.constant 0.000000e+00 : f32
    %0 = vector.broadcast %cst : f32 to vector<1x64xf32>
    %cst_0 = arith.constant 0.000000e+00 : f32
    %1 = vector.broadcast %cst_0 : f32 to vector<1x64xf32>
    %c0 = arith.constant 0 : index
    %c0_1 = arith.constant 0 : index
    %2 = vector.load %arg5[%c0, %c0_1] : memref<18x64xf32, #tpu.memory_space<vmem>>, vector<1x64xf32>
    tpu.vector_store %arg5[%c0, %c0_1], %0 {strides = array<i32>} : memref<18x64xf32, #tpu.memory_space<vmem>>, vector<1x64xf32>,
    %c0_2 = arith.constant 0 : index
    %c0_3 = arith.constant 0 : index
    %c0_4 = arith.constant 0 : index
    %3 = vector.load %arg1[%c0_2, %c0_3, %c0_4] : memref<1x16x64xf32, #tpu.memory_space<vmem>>, vector<1x16x64xf32>
    %4 = vector.shape_cast %3 : vector<1x16x64xf32> to vector<16x64xf32>
    %c1 = arith.constant 1 : index
    %c0_5 = arith.constant 0 : index
    %5 = vector.load %arg5[%c1, %c0_5] : memref<18x64xf32, #tpu.memory_space<vmem>>, vector<16x64xf32>
    tpu.vector_store %arg5[%c1, %c0_5], %4 {strides = array<i32>} : memref<18x64xf32, #tpu.memory_space<vmem>>, vector<16x64xf32>,
    %c17 = arith.constant 17 : index
    %c0_6 = arith.constant 0 : index
    %6 = vector.load %arg5[%c17, %c0_6] : memref<18x64xf32, #tpu.memory_space<vmem>>, vector<1x64xf32>
    tpu.vector_store %arg5[%c17, %c0_6], %1 {strides = array<i32>} : memref<18x64xf32, #tpu.memory_space<vmem>>, vector<1x64xf32>,
    %c0_7 = arith.constant 0 : index
    %c0_8 = arith.constant 0 : index
    %7 = vector.load %arg5[%c0_7, %c0_8] : memref<18x64xf32, #tpu.memory_space<vmem>>, vector<16x64xf32>
    %c0_9 = arith.constant 0 : index
    %c0_10 = arith.constant 0 : index
    %c0_11 = arith.constant 0 : index
    %8 = vector.load %arg2[%c0_9, %c0_10, %c0_11] : memref<3x64x64xf32, #tpu.memory_space<vmem>>, vector<1x64x64xf32>
    %9 = vector.shape_cast %8 : vector<1x64x64xf32> to vector<64x64xf32>
    %cst_12 = arith.constant dense<0.000000e+00> : vector<16x64xf32>
    %10 = tpu.matmul %7, %9, %cst_12 {dimension_numbers = #tpu.dot_dimension_numbers<[1], [0], [0], [1], [0, 0, 1, 1], [], []>} : vector<16x64xf32>, vector<64x64xf32>, vector<16x64xf32> -> vector<16x64xf32>
    %c1_13 = arith.constant 1 : index
    %c0_14 = arith.constant 0 : index
    %11 = vector.load %arg5[%c1_13, %c0_14] : memref<18x64xf32, #tpu.memory_space<vmem>>, vector<16x64xf32>
    %c1_15 = arith.constant 1 : index
    %c0_16 = arith.constant 0 : index
    %c0_17 = arith.constant 0 : index
    %12 = vector.load %arg2[%c1_15, %c0_16, %c0_17] : memref<3x64x64xf32, #tpu.memory_space<vmem>>, vector<1x64x64xf32>
    %13 = vector.shape_cast %12 : vector<1x64x64xf32> to vector<64x64xf32>
    %cst_18 = arith.constant dense<0.000000e+00> : vector<16x64xf32>
    %14 = tpu.matmul %11, %13, %cst_18 {dimension_numbers = #tpu.dot_dimension_numbers<[1], [0], [0], [1], [0, 0, 1, 1], [], []>} : vector<16x64xf32>, vector<64x64xf32>, vector<16x64xf32> -> vector<16x64xf32>
    %15 = arith.addf %10, %14 : vector<16x64xf32>
    %c2 = arith.constant 2 : index
    %c0_19 = arith.constant 0 : index
    %16 = vector.load %arg5[%c2, %c0_19] : memref<18x64xf32, #tpu.memory_space<vmem>>, vector<16x64xf32>
    %c2_20 = arith.constant 2 : index
    %c0_21 = arith.constant 0 : index
    %c0_22 = arith.constant 0 : index
    %17 = vector.load %arg2[%c2_20, %c0_21, %c0_22] : memref<3x64x64xf32, #tpu.memory_space<vmem>>, vector<1x64x64xf32>
    %18 = vector.shape_cast %17 : vector<1x64x64xf32> to vector<64x64xf32>
    %cst_23 = arith.constant dense<0.000000e+00> : vector<16x64xf32>
    %19 = tpu.matmul %16, %18, %cst_23 {dimension_numbers = #tpu.dot_dimension_numbers<[1], [0], [0], [1], [0, 0, 1, 1], [], []>} : vector<16x64xf32>, vector<64x64xf32>, vector<16x64xf32> -> vector<16x64xf32>
    %20 = arith.addf %15, %19 : vector<16x64xf32>
    %c0_24 = arith.constant 0 : index
    %c0_25 = arith.constant 0 : index
    %21 = vector.load %arg3[%c0_24, %c0_25] : memref<1x64xf32, #tpu.memory_space<vmem>>, vector<1x64xf32>
    %22 = vector.broadcast %21 : vector<1x64xf32> to vector<16x64xf32>
    %23 = arith.addf %20, %22 : vector<16x64xf32>
    %c0_26 = arith.constant 0 : index
    %c0_27 = arith.constant 0 : index
    %c0_28 = arith.constant 0 : index
    %24 = vector.load %arg4[%c0_26, %c0_27, %c0_28] : memref<1x16x64xf32, #tpu.memory_space<vmem>>, vector<1x16x64xf32>
    %25 = vector.shape_cast %24 : vector<1x16x64xf32> to vector<16x64xf32>
    %26 = vector.shape_cast %23 : vector<16x64xf32> to vector<1x16x64xf32>
    tpu.vector_store %arg4[%c0_26, %c0_27, %c0_28], %26 {strides = array<i32>} : memref<1x16x64xf32, #tpu.memory_space<vmem>>, vector<1x16x64xf32>,
    return
  }
  func.func @transform_0(%arg0: i32) -> (i32, i32, i32) {
    %c0_i32 = arith.constant 0 : i32
    %c0_i32_0 = arith.constant 0 : i32
    %c0_i32_1 = arith.constant 0 : i32
    return %arg0, %c0_i32, %c0_i32_0 : i32, i32, i32
  }
  func.func @transform_1(%arg0: i32) -> (i32, i32, i32) {
    %c0_i32 = arith.constant 0 : i32
    %c0_i32_0 = arith.constant 0 : i32
    %c0_i32_1 = arith.constant 0 : i32
    %c0_i32_2 = arith.constant 0 : i32
    return %c0_i32, %c0_i32_0, %c0_i32_1 : i32, i32, i32
  }
  func.func @transform_2(%arg0: i32) -> (i32, i32) {
    %c0_i32 = arith.constant 0 : i32
    %c0_i32_0 = arith.constant 0 : i32
    %c0_i32_1 = arith.constant 0 : i32
    return %c0_i32, %c0_i32_0 : i32, i32
  }
  func.func @transform_3(%arg0: i32) -> (i32, i32, i32) {
    %c0_i32 = arith.constant 0 : i32
    %c0_i32_0 = arith.constant 0 : i32
    %c0_i32_1 = arith.constant 0 : i32
    return %arg0, %c0_i32, %c0_i32_0 : i32, i32, i32
  }
}

</mosaic_0001>

<llo_original>
// kernel: tpu_custom_call.1
$region0: #{tpu_custom_call.1}
  #allocation0 [shape = 'u32[]', space=smem, size = 0x4, offset = 0x4, fixed_abs, tag = 'smem constant byte address 0x4 - core index']
  #allocation1 [shape = 'u32[144,128]{1,0:T(1,128)}', space=vmem, size = 0x12000, scoped, tag = 'internal scratch']
  #allocation2 [shape = 'f32[18,64]{1,0:T(8,128)}', space=vmem, size = 0x3000, scoped, tag = 'scratch operand']
  %s0 = inlined_call_operand.hbm [shape: f32[2,16,64], index: 0, kind: input, shape index: {}]
  %s1 = inlined_call_operand.hbm [shape: f32[3,64,64], index: 1, kind: input, shape index: {}]
  %s2 = inlined_call_operand.vmem [shape: f32[1,64], index: 2, kind: input, shape index: {}]
  %s3 = inlined_call_operand.hbm [shape: f32[2,16,64], index: 3, kind: output, shape index: {}]
  %s4 = sld [smem:[#allocation0]]
  $region53: #{tpu_custom_call.1} parent=0
    _
  %s6 = ssub.s32 1, %s4
  %s7 = scalar_select 0, %s6, %s4
  $region1: #{tpu_custom_call.1} parent=0
    #allocation3 [shape = 'u8[16384]{0}', space=vmem, size = 0x4000, scoped, tag = 'input window, operand 0']
    #allocation4 [shape = 's32[2]{0}', space=sflag, size = 0x8, scoped, tag = 'scoped memory for tpu_custom_call.1']
    #allocation5 [shape = 's32[2]{0}', space=sflag, size = 0x8, scoped, tag = 'scoped memory for tpu_custom_call.1']
    #allocation6 [shape = 'u8[98304]{0}', space=vmem, size = 0x18000, scoped, tag = 'input window, operand 1, single buffered']
    #allocation7 [shape = 's32[1]{0}', space=sflag, size = 0x4, scoped, tag = 'scoped memory for tpu_custom_call.1']
    #allocation8 [shape = 'u8[16384]{0}', space=vmem, size = 0x4000, scoped, tag = 'output window, operand 0']
    %8 = vsyncpa [#allocation4], 0
    %s9 = scalar_lea.sflag [#allocation4], 1
    %10 = vsyncpa %s9, 0
    %11 = vsyncpa [#allocation7], 0
    %12 = vsyncpa [#allocation5], 0
    %s13 = scalar_lea.sflag [#allocation5], 1
    %14 = vsyncpa %s13, 0
    loop: start=0, step=1, limit=4
    $region2: #{tpu_custom_call.1} parent=1 // loop_pre_header
      _
    $region3: #{tpu_custom_call.1} parent=1 // loop_header
      %s16 = sphi 0, %s20
      %p17 = scmp.ge.s32.totalorder %s16, 4
      %s26 = sphi 0, %s28
      %s29 = sphi 0, %s26
      %s30 = sphi 0, %s29
      %s46 = sphi 0, %s30
      %s50 = sphi 0, %s50
      %s52 = sphi 0, %s50
      %s53 = sphi 0, %s52
      %s67 = sphi 0, %s53
      %s71 = sphi 0, %s71
      %s73 = sphi 0, %s71
      %s74 = sphi 0, %s73
      %s88 = sphi 0, %s74
      %s94 = sphi 0, %s96
      %s97 = sphi 0, %s94
      %s98 = sphi 0, %s97
      %s114 = sphi 0, %s98
    $region4: #{tpu_custom_call.1} parent=1 // loop_header_branch
      %19 = sbr.rel (%p17) target = $region8
    $region5: #{tpu_custom_call.1} parent=1 // loop_body
      %s21 = ssub.s32 %s16, 1
      %s22 = ssub.s32 %s16, 2
      %s23 = sadd.s32 %s16, 1
      %s24 = ssub.s32 %s16, %s23
      %p25 = scmp.eq.s32.totalorder %s24, 0
      %s27 = sadd.s32 %s26, 1
      %s28 = scalar_select %p25, %s26, %s27
      %p31 = pneg %p25
      %p32 = scmp.eq.s32.totalorder %s16, 1
      %p33 = por %p31, %p32
      %p34 = scmp.ne.s32.totalorder %s26, %s29
      %p35 = scmp.eq.s32.totalorder %s16, 0
      %p36 = por %p34, %p35
      %p37 = scmp.ne.s32.totalorder %s26, %s29
      %p38 = scmp.eq.s32.totalorder %s21, 1
      %p39 = por %p37, %p38
      %p40 = scmp.ne.s32.totalorder %s29, %s30
      %p41 = scmp.eq.s32.totalorder %s21, 0
      %p42 = por %p40, %p41
      %p43 = scmp.ne.s32.totalorder %s29, %s30
      %p44 = scmp.eq.s32.totalorder %s22, 1
      %p45 = por %p43, %p44
      %p47 = scmp.ne.s32.totalorder %s30, %s46
      %p48 = scmp.eq.s32.totalorder %s22, 0
      %p49 = por %p47, %p48
      %s51 = sadd.s32 %s50, 1
      %p54 = scmp.eq.s32.totalorder %s16, 1
      %p55 = scmp.ne.s32.totalorder %s50, %s52
      %p56 = scmp.eq.s32.totalorder %s16, 0
      %p57 = por %p55, %p56
      %p58 = scmp.ne.s32.totalorder %s50, %s52
      %p59 = scmp.eq.s32.totalorder %s21, 1
      %p60 = por %p58, %p59
      %p61 = scmp.ne.s32.totalorder %s52, %s53
      %p62 = scmp.eq.s32.totalorder %s21, 0
      %p63 = por %p61, %p62
      %p64 = scmp.ne.s32.totalorder %s52, %s53
      %p65 = scmp.eq.s32.totalorder %s22, 1
      %p66 = por %p64, %p65
      %p68 = scmp.ne.s32.totalorder %s53, %s67
      %p69 = scmp.eq.s32.totalorder %s22, 0
      %p70 = por %p68, %p69
      %s72 = sadd.s32 %s71, 1
      %p75 = scmp.eq.s32.totalorder %s16, 1
      %p76 = scmp.ne.s32.totalorder %s71, %s73
      %p77 = scmp.eq.s32.totalorder %s16, 0
      %p78 = por %p76, %p77
      %p79 = scmp.ne.s32.totalorder %s71, %s73
      %p80 = scmp.eq.s32.totalorder %s21, 1
      %p81 = por %p79, %p80
      %p82 = scmp.ne.s32.totalorder %s73, %s74
      %p83 = scmp.eq.s32.totalorder %s21, 0
      %p84 = por %p82, %p83
      %p85 = scmp.ne.s32.totalorder %s73, %s74
      %p86 = scmp.eq.s32.totalorder %s22, 1
      %p87 = por %p85, %p86
      %p89 = scmp.ne.s32.totalorder %s74, %s88
      %p90 = scmp.eq.s32.totalorder %s22, 0
      %p91 = por %p89, %p90
      %s92 = ssub.s32 %s16, %s23
      %p93 = scmp.eq.s32.totalorder %s92, 0
      %s95 = sadd.s32 %s94, 1
      %s96 = scalar_select %p93, %s94, %s95
      %p99 = pneg %p93
      %p100 = scmp.eq.s32.totalorder %s16, 1
      %p101 = por %p99, %p100
      %p102 = scmp.ne.s32.totalorder %s94, %s97
      %p103 = scmp.eq.s32.totalorder %s16, 0
      %p104 = por %p102, %p103
      %p105 = scmp.ne.s32.totalorder %s94, %s97
      %p106 = scmp.eq.s32.totalorder %s21, 1
      %p107 = por %p105, %p106
      %p108 = scmp.ne.s32.totalorder %s97, %s98
      %p109 = scmp.eq.s32.totalorder %s21, 0
      %p110 = por %p108, %p109
      %p111 = scmp.ne.s32.totalorder %s97, %s98
      %p112 = scmp.eq.s32.totalorder %s22, 1
      %p113 = por %p111, %p112
      %p115 = scmp.ne.s32.totalorder %s98, %s114
      %p116 = scmp.eq.s32.totalorder %s22, 0
      %p117 = por %p115, %p116
      %p118 = scmp.le.s32.totalorder 1, %s16
      %p119 = scmp.lt.s32.totalorder %s16, 3
      %p120 = pnand %p118, %p119
      %p121 = pneg %p120
      // Predicated region
      $region9: #{tpu_custom_call.1} parent=5 // pred_check
        _
      $region10: #{tpu_custom_call.1} parent=5 // pred_check_branch
        %123 = sbr.rel (%p120) target = $region12
      $region11: #{tpu_custom_call.1} parent=5 // pred_region
        %s124 = ssub.s32 %s16, 1
        // Predicated region
        $region13: #{tpu_custom_call.1} parent=11 // pred_check
          %p125 = pneg %p63
        $region14: #{tpu_custom_call.1} parent=11 // pred_check_branch
          %127 = sbr.rel (%p125) target = $region16
        $region15: #{tpu_custom_call.1} parent=11 // pred_region
          %s129 = ssub.s32 3072, 3072
          %130 = vsyncadd [#allocation7], %s129
          %s131 = sshll.u32 [#allocation6], 4
          %s132 = int_to_ptr.vmem [resolvable:$true] %s131
          %137 = dma.hbm_to_vmem [thread:$0]  %s1, 3072, %s132, [#allocation7], 128, 128, 8
        $region16: #{tpu_custom_call.1} parent=11 // pred_fallthru
          _
        // Predicated region
        $region17: #{tpu_custom_call.1} parent=11 // pred_check
          %p138 = pneg %p84
        $region18: #{tpu_custom_call.1} parent=11 // pred_check_branch
          %140 = sbr.rel (%p138) target = $region20
        $region19: #{tpu_custom_call.1} parent=11 // pred_region
          _
        $region20: #{tpu_custom_call.1} parent=11 // pred_fallthru
          _
      $region12: #{tpu_custom_call.1} parent=5 // pred_fallthru
        _
      %p141 = scmp.lt.s32.totalorder %s16, 2
      // Predicated region
      $region21: #{tpu_custom_call.1} parent=5 // pred_check
        %p142 = pneg %p141
      $region22: #{tpu_custom_call.1} parent=5 // pred_check_branch
        %144 = sbr.rel (%p142) target = $region24
      $region23: #{tpu_custom_call.1} parent=5 // pred_region
        // Predicated region
        $region25: #{tpu_custom_call.1} parent=23 // pred_check
          %p145 = pneg %p36
        $region26: #{tpu_custom_call.1} parent=23 // pred_check_branch
          %147 = sbr.rel (%p145) target = $region28
        $region27: #{tpu_custom_call.1} parent=23 // pred_region
          %s148 = sand.u32 %s26, 1
          %s149 = scalar_lea.sflag [#allocation4], %s148
          %s150 = sand.u32 %s26, 1
          %s151 = smul.addr %s150, 16
          %s152 = scalar_lea.vmem [#allocation3], %s151
          %s154 = ssub.s32 256, 256
          %155 = vsyncadd %s149, %s154
          %s156 = smul.addr %s16, 2
          %s157 = smul.addr %s156, 128
          %s158 = scalar_lea.hbm %s0, %s157
          %s159 = sshll.u32 %s152, 4
          %s160 = int_to_ptr.vmem [resolvable:$true] %s159
          %165 = dma.hbm_to_vmem [thread:$0]  %s158, 256, %s160, %s149, 128, 128, 8
        $region28: #{tpu_custom_call.1} parent=23 // pred_fallthru
          _
      $region24: #{tpu_custom_call.1} parent=5 // pred_fallthru
        _
      %p166 = scmp.le.s32.totalorder 1, %s16
      %p167 = scmp.lt.s32.totalorder %s16, 3
      %p168 = pnand %p166, %p167
      %p169 = pneg %p168
      // Predicated region
      $region29: #{tpu_custom_call.1} parent=5 // pred_check
        _
      $region30: #{tpu_custom_call.1} parent=5 // pred_check_branch
        %171 = sbr.rel (%p168) target = $region32
      $region31: #{tpu_custom_call.1} parent=5 // pred_region
        %s172 = ssub.s32 %s16, 1
        %s173 = sand.u32 %s29, 1
        %s174 = scalar_lea.sflag [#allocation4], %s173
        %s175 = sand.u32 %s29, 1
        %s176 = smul.addr %s175, 16
        %s177 = scalar_lea.vmem [#allocation3], %s176
        // Predicated region
        $region33: #{tpu_custom_call.1} parent=31 // pred_check
          %p178 = pneg %p42
        $region34: #{tpu_custom_call.1} parent=31 // pred_check_branch
          %180 = sbr.rel (%p178) target = $region36
        $region35: #{tpu_custom_call.1} parent=31 // pred_region
          %181 = dma.done %s174, 256
        $region36: #{tpu_custom_call.1} parent=31 // pred_fallthru
          _
        // Predicated region
        $region37: #{tpu_custom_call.1} parent=31 // pred_check
          %p182 = pneg %p63
        $region38: #{tpu_custom_call.1} parent=31 // pred_check_branch
          %184 = sbr.rel (%p182) target = $region40
        $region39: #{tpu_custom_call.1} parent=31 // pred_region
          %185 = dma.done [#allocation7], 3072
        $region40: #{tpu_custom_call.1} parent=31 // pred_fallthru
          _
        %s186 = sand.u32 %s29, 1
        %s187 = scalar_lea.sflag [#allocation4], %s186
        %s188 = sand.u32 %s29, 1
        %s189 = smul.addr %s188, 16
        %s190 = scalar_lea.vmem [#allocation3], %s189
        %p191 = pneg %p42
        %p192 = pneg %p39
        %p193 = pneg %p63
        %p194 = pneg %p60
        %p195 = pneg %p84
        %p196 = pneg %p81
        %p197 = pneg %p110
        %p198 = pneg %p107
        %s199 = sand.u32 %s97, 1
        %s200 = scalar_lea.sflag [#allocation5], %s199
        %s201 = sand.u32 %s97, 1
        %s202 = smul.addr %s201, 16
        %s203 = scalar_lea.vmem [#allocation8], %s202
        %vm204 = vcmask 516096
        %205 = vst.msk [vmem:[#allocation2] sm:$0x1] %vm204, 0.0
        %v206 = vld [vmem:[%s177] sm:$0xff]
        %v207 = vld [vmem:[%s177 + $0x8] sm:$0xff]
        %vm208 = vcmask 523264
        %209 = vst.msk [vmem:[#allocation2 + $0x1] sm:$0xff] %vm208, %v206
        %210 = vst.msk [vmem:[#allocation2 + $0x9] sm:$0xff] %vm208, %v207
        %211 = vst.msk [vmem:[#allocation2 + $0x11] sm:$0x1] %vm204, 0.0
        %v212 = vld [vmem:[#allocation2] sm:$0xff]
        %v213 = vld [vmem:[#allocation2 + $0x8] sm:$0xff]
        %v214 = vld [vmem:[#allocation6] sm:$0xff]
        %v215 = vld [vmem:[#allocation6 + $0x8] sm:$0xff]
        %v216 = vld [vmem:[#allocation6 + $0x10] sm:$0xff]
        %v217 = vld [vmem:[#allocation6 + $0x18] sm:$0xff]
        %v218 = vld [vmem:[#allocation6 + $0x20] sm:$0xff]
        %v219 = vld [vmem:[#allocation6 + $0x28] sm:$0xff]
        %v220 = vld [vmem:[#allocation6 + $0x30] sm:$0xff]
        %v221 = vld [vmem:[#allocation6 + $0x38] sm:$0xff]
        %v222 = vld [vmem:[#allocation2 + $0x1] sm:$0xff]
        %v223 = vld [vmem:[#allocation2 + $0x9] sm:$0xff]
        %s224 = scalar_lea.vmem [#allocation6], 64
        %v225 = vld [vmem:[%s224] sm:$0xff]
        %v226 = vld [vmem:[%s224 + $0x8] sm:$0xff]
        %v227 = vld [vmem:[%s224 + $0x10] sm:$0xff]
        %v228 = vld [vmem:[%s224 + $0x18] sm:$0xff]
        %v229 = vld [vmem:[%s224 + $0x20] sm:$0xff]
        %v230 = vld [vmem:[%s224 + $0x28] sm:$0xff]
        %v231 = vld [vmem:[%s224 + $0x30] sm:$0xff]
        %v232 = vld [vmem:[%s224 + $0x38] sm:$0xff]
        %v234 = vsel %vm208, %v222, 0
        %v237 = vsel %vm208, %v223, 0
        %239 = vmatprep.subr.mxu0 0.0
        %240 = vmatpush1.msra.mxu0 %v225
        %241 = vmatprep.subr.mxu0 0.0
        %242 = vmatpush1.msra.mxu0 %v226
        %243 = vmatprep.subr.mxu0 0.0
        %244 = vmatpush1.msra.mxu0 %v227
        %245 = vmatprep.subr.mxu0 0.0
        %246 = vmatpush1.msra.mxu0 %v228
        %247 = vmatprep.subr.mxu0 0.0
        %248 = vmatpush1.msra.mxu0 %v229
        %249 = vmatprep.subr.mxu0 0.0
        %250 = vmatpush1.msra.mxu0 %v230
        %251 = vmatprep.subr.mxu0 0.0
        %252 = vmatpush1.msra.mxu0 %v231
        %253 = vmatprep.subr.mxu0 0.0
        %254 = vmatpush1.msra.mxu0 %v232
        %255 = vmatprep.subr.mxu0 0.0
        %256 = vmatpush1.msra.mxu0 0.0
        %257 = vmatprep.subr.mxu0 0.0
        %258 = vmatpush1.msra.mxu0 0.0
        %259 = vmatprep.subr.mxu0 0.0
        %260 = vmatpush1.msra.mxu0 0.0
        %261 = vmatprep.subr.mxu0 0.0
        %262 = vmatpush1.msra.mxu0 0.0
        %263 = vmatprep.subr.mxu0 0.0
        %264 = vmatpush1.msra.mxu0 0.0
        %265 = vmatprep.subr.mxu0 0.0
        %266 = vmatpush1.msra.mxu0 0.0
        %267 = vmatprep.subr.mxu0 0.0
        %268 = vmatpush1.msra.mxu0 0.0
        %269 = vmatprep.subr.mxu0 0.0
        %270 = vmatpush1.msra.mxu0 0.0
        %271 = vmatprep.subr.mxu0 0.0
        %272 = vmatpush1.msra.mxu0 0.0
        %273 = vmatprep.subr.mxu0 0.0
        %274 = vmatpush1.msra.mxu0 0.0
        %275 = vmatprep.subr.mxu0 0.0
        %276 = vmatpush1.msra.mxu0 0.0
        %277 = vmatprep.subr.mxu0 0.0
        %278 = vmatpush1.msra.mxu0 0.0
        %279 = vmatprep.subr.mxu0 0.0
        %280 = vmatpush1.msra.mxu0 0.0
        %281 = vmatprep.subr.mxu0 0.0
        %282 = vmatpush1.msra.mxu0 0.0
        %283 = vmatprep.subr.mxu0 0.0
        %284 = vmatpush1.msra.mxu0 0.0
        %285 = vmatprep.subr.mxu0 0.0
        %286 = vmatpush1.msra.mxu0 0.0
        %287 = vmatprep.subr.mxu0 0.0
        %288 = vmatpush1.msra.mxu0 0.0
        %289 = vmatprep.subr.mxu0 0.0
        %290 = vmatpush1.msra.mxu0 0.0
        %291 = vmatprep.subr.mxu0 0.0
        %292 = vmatpush1.msra.mxu0 0.0
        %293 = vmatprep.subr.mxu0 0.0
        %294 = vmatpush1.msra.mxu0 0.0
        %295 = vmatprep.subr.mxu0 0.0
        %296 = vmatpush1.msra.mxu0 0.0
        %297 = vmatprep.subr.mxu0 0.0
        %298 = vmatpush1.msra.mxu0 0.0
        %299 = vmatprep.subr.mxu0 0.0
        %300 = vmatpush1.msra.mxu0 0.0
        %301 = vmatprep.subr.mxu0 0.0
        %302 = vmatpush1.msra.mxu0 0.0
        %303 = vmatprep.mubr.f32.mxu0 0.0
        %304 = vmatmul.mubr.f32.gmra.mrb[0].mxu0 %v234
        %v305 = vpop.f32.mrb[0].mxu0
        %v306 = vadd.f32 0.0, %v305
        %v307 = vpop.f32.mrb[0].mxu0
        %308 = vmatprep.mubr.f32.mxu0 0.0
        %309 = vmatmul.mubr.f32.gmra.mrb[0].mxu0 %v237
        %v310 = vpop.f32.mrb[0].mxu0
        %v311 = vadd.f32 0.0, %v310
        %v312 = vpop.f32.mrb[0].mxu0
        %313 = vdwg.mxu0
        %v315 = vsel %vm208, %v212, 0
        %v318 = vsel %vm208, %v213, 0
        %320 = vmatprep.subr.mxu0 0.0
        %321 = vmatpush1.msra.mxu0 %v214
        %322 = vmatprep.subr.mxu0 0.0
        %323 = vmatpush1.msra.mxu0 %v215
        %324 = vmatprep.subr.mxu0 0.0
        %325 = vmatpush1.msra.mxu0 %v216
        %326 = vmatprep.subr.mxu0 0.0
        %327 = vmatpush1.msra.mxu0 %v217
        %328 = vmatprep.subr.mxu0 0.0
        %329 = vmatpush1.msra.mxu0 %v218
        %330 = vmatprep.subr.mxu0 0.0
        %331 = vmatpush1.msra.mxu0 %v219
        %332 = vmatprep.subr.mxu0 0.0
        %333 = vmatpush1.msra.mxu0 %v220
        %334 = vmatprep.subr.mxu0 0.0
        %335 = vmatpush1.msra.mxu0 %v221
        %336 = vmatprep.subr.mxu0 0.0
        %337 = vmatpush1.msra.mxu0 0.0
        %338 = vmatprep.subr.mxu0 0.0
        %339 = vmatpush1.msra.mxu0 0.0
        %340 = vmatprep.subr.mxu0 0.0
        %341 = vmatpush1.msra.mxu0 0.0
        %342 = vmatprep.subr.mxu0 0.0
        %343 = vmatpush1.msra.mxu0 0.0
        %344 = vmatprep.subr.mxu0 0.0
        %345 = vmatpush1.msra.mxu0 0.0
        %346 = vmatprep.subr.mxu0 0.0
        %347 = vmatpush1.msra.mxu0 0.0
        %348 = vmatprep.subr.mxu0 0.0
        %349 = vmatpush1.msra.mxu0 0.0
        %350 = vmatprep.subr.mxu0 0.0
        %351 = vmatpush1.msra.mxu0 0.0
        %352 = vmatprep.subr.mxu0 0.0
        %353 = vmatpush1.msra.mxu0 0.0
        %354 = vmatprep.subr.mxu0 0.0
        %355 = vmatpush1.msra.mxu0 0.0
        %356 = vmatprep.subr.mxu0 0.0
        %357 = vmatpush1.msra.mxu0 0.0
        %358 = vmatprep.subr.mxu0 0.0
        %359 = vmatpush1.msra.mxu0 0.0
        %360 = vmatprep.subr.mxu0 0.0
        %361 = vmatpush1.msra.mxu0 0.0
        %362 = vmatprep.subr.mxu0 0.0
        %363 = vmatpush1.msra.mxu0 0.0
        %364 = vmatprep.subr.mxu0 0.0
        %365 = vmatpush1.msra.mxu0 0.0
        %366 = vmatprep.subr.mxu0 0.0
        %367 = vmatpush1.msra.mxu0 0.0
        %368 = vmatprep.subr.mxu0 0.0
        %369 = vmatpush1.msra.mxu0 0.0
        %370 = vmatprep.subr.mxu0 0.0
        %371 = vmatpush1.msra.mxu0 0.0
        %372 = vmatprep.subr.mxu0 0.0
        %373 = vmatpush1.msra.mxu0 0.0
        %374 = vmatprep.subr.mxu0 0.0
        %375 = vmatpush1.msra.mxu0 0.0
        %376 = vmatprep.subr.mxu0 0.0
        %377 = vmatpush1.msra.mxu0 0.0
        %378 = vmatprep.subr.mxu0 0.0
        %379 = vmatpush1.msra.mxu0 0.0
        %380 = vmatprep.subr.mxu0 0.0
        %381 = vmatpush1.msra.mxu0 0.0
        %382 = vmatprep.subr.mxu0 0.0
        %383 = vmatpush1.msra.mxu0 0.0
        %384 = vmatprep.mubr.f32.mxu0 0.0
        %385 = vmatmul.mubr.f32.gmra.mrb[0].mxu0 %v315
        %v386 = vpop.f32.mrb[0].mxu0
        %v387 = vadd.f32 %v306, %v386
        %v388 = vpop.f32.mrb[0].mxu0
        %389 = vmatprep.mubr.f32.mxu0 0.0
        %390 = vmatmul.mubr.f32.gmra.mrb[0].mxu0 %v318
        %v391 = vpop.f32.mrb[0].mxu0
        %v392 = vadd.f32 %v311, %v391
        %v393 = vpop.f32.mrb[0].mxu0
        %394 = vdwg.mxu0
        %v395 = vld [vmem:[#allocation2 + $0x2] sm:$0xff]
        %v396 = vld [vmem:[#allocation2 + $0xa] sm:$0xff]
        %s397 = scalar_lea.vmem [#allocation6], 128
        %v398 = vld [vmem:[%s397] sm:$0xff]
        %v399 = vld [vmem:[%s397 + $0x8] sm:$0xff]
        %v400 = vld [vmem:[%s397 + $0x10] sm:$0xff]
        %v401 = vld [vmem:[%s397 + $0x18] sm:$0xff]
        %v402 = vld [vmem:[%s397 + $0x20] sm:$0xff]
        %v403 = vld [vmem:[%s397 + $0x28] sm:$0xff]
        %v404 = vld [vmem:[%s397 + $0x30] sm:$0xff]
        %v405 = vld [vmem:[%s397 + $0x38] sm:$0xff]
        %v407 = vsel %vm208, %v395, 0
        %v410 = vsel %vm208, %v396, 0
        %412 = vmatprep.subr.mxu0 0.0
        %413 = vmatpush1.msra.mxu0 %v398
        %414 = vmatprep.subr.mxu0 0.0
        %415 = vmatpush1.msra.mxu0 %v399
        %416 = vmatprep.subr.mxu0 0.0
        %417 = vmatpush1.msra.mxu0 %v400
        %418 = vmatprep.subr.mxu0 0.0
        %419 = vmatpush1.msra.mxu0 %v401
        %420 = vmatprep.subr.mxu0 0.0
        %421 = vmatpush1.msra.mxu0 %v402
        %422 = vmatprep.subr.mxu0 0.0
        %423 = vmatpush1.msra.mxu0 %v403
        %424 = vmatprep.subr.mxu0 0.0
        %425 = vmatpush1.msra.mxu0 %v404
        %426 = vmatprep.subr.mxu0 0.0
        %427 = vmatpush1.msra.mxu0 %v405
        %428 = vmatprep.subr.mxu0 0.0
        %429 = vmatpush1.msra.mxu0 0.0
        %430 = vmatprep.subr.mxu0 0.0
        %431 = vmatpush1.msra.mxu0 0.0
        %432 = vmatprep.subr.mxu0 0.0
        %433 = vmatpush1.msra.mxu0 0.0
        %434 = vmatprep.subr.mxu0 0.0
        %435 = vmatpush1.msra.mxu0 0.0
        %436 = vmatprep.subr.mxu0 0.0
        %437 = vmatpush1.msra.mxu0 0.0
        %438 = vmatprep.subr.mxu0 0.0
        %439 = vmatpush1.msra.mxu0 0.0
        %440 = vmatprep.subr.mxu0 0.0
        %441 = vmatpush1.msra.mxu0 0.0
        %442 = vmatprep.subr.mxu0 0.0
        %443 = vmatpush1.msra.mxu0 0.0
        %444 = vmatprep.subr.mxu0 0.0
        %445 = vmatpush1.msra.mxu0 0.0
        %446 = vmatprep.subr.mxu0 0.0
        %447 = vmatpush1.msra.mxu0 0.0
        %448 = vmatprep.subr.mxu0 0.0
        %449 = vmatpush1.msra.mxu0 0.0
        %450 = vmatprep.subr.mxu0 0.0
        %451 = vmatpush1.msra.mxu0 0.0
        %452 = vmatprep.subr.mxu0 0.0
        %453 = vmatpush1.msra.mxu0 0.0
        %454 = vmatprep.subr.mxu0 0.0
        %455 = vmatpush1.msra.mxu0 0.0
        %456 = vmatprep.subr.mxu0 0.0
        %457 = vmatpush1.msra.mxu0 0.0
        %458 = vmatprep.subr.mxu0 0.0
        %459 = vmatpush1.msra.mxu0 0.0
        %460 = vmatprep.subr.mxu0 0.0
        %461 = vmatpush1.msra.mxu0 0.0
        %462 = vmatprep.subr.mxu0 0.0
        %463 = vmatpush1.msra.mxu0 0.0
        %464 = vmatprep.subr.mxu0 0.0
        %465 = vmatpush1.msra.mxu0 0.0
        %466 = vmatprep.subr.mxu0 0.0
        %467 = vmatpush1.msra.mxu0 0.0
        %468 = vmatprep.subr.mxu0 0.0
        %469 = vmatpush1.msra.mxu0 0.0
        %470 = vmatprep.subr.mxu0 0.0
        %471 = vmatpush1.msra.mxu0 0.0
        %472 = vmatprep.subr.mxu0 0.0
        %473 = vmatpush1.msra.mxu0 0.0
        %474 = vmatprep.subr.mxu0 0.0
        %475 = vmatpush1.msra.mxu0 0.0
        %476 = vmatprep.mubr.f32.mxu0 0.0
        %477 = vmatmul.mubr.f32.gmra.mrb[0].mxu0 %v407
        %v478 = vpop.f32.mrb[0].mxu0
        %v479 = vadd.f32 0.0, %v478
        %v480 = vpop.f32.mrb[0].mxu0
        %481 = vmatprep.mubr.f32.mxu0 0.0
        %482 = vmatmul.mubr.f32.gmra.mrb[0].mxu0 %v410
        %v483 = vpop.f32.mrb[0].mxu0
        %v484 = vadd.f32 0.0, %v483
        %v485 = vpop.f32.mrb[0].mxu0
        %486 = vdwg.mxu0
        %v487 = vadd.f32 %v387, %v479
        %v488 = vadd.f32 %v392, %v484
        %v489 = vld [vmem:[%s2] sm:$0x1]
        %v491 = vlaneseq
        %v492 = vshrl.u32 %v491, 7
        %v493 = vsub.s32 0, %v492
        %v494 = vrot.slane %v489, %v493
        %v496 = vadd.f32 %v487, %v494
        %v497 = vadd.f32 %v488, %v494
        %498 = vst.msk [vmem:[%s203] sm:$0xff] %vm208, %v496
        %499 = vst.msk [vmem:[%s203 + $0x8] sm:$0xff] %vm208, %v497
        %s500 = sand.u32 %s97, 1
        %s501 = scalar_lea.sflag [#allocation5], %s500
        %s502 = sand.u32 %s97, 1
        %s503 = smul.addr %s502, 16
        %s504 = scalar_lea.vmem [#allocation8], %s503
        // Predicated region
        $region41: #{tpu_custom_call.1} parent=31 // pred_check
          %p505 = pneg %p107
        $region42: #{tpu_custom_call.1} parent=31 // pred_check_branch
          %507 = sbr.rel (%p505) target = $region44
        $region43: #{tpu_custom_call.1} parent=31 // pred_region
          %s509 = ssub.s32 256, 256
          %510 = vsyncadd %s501, %s509
          %s511 = smul.addr %s21, 2
          %s512 = smul.addr %s511, 128
          %s513 = scalar_lea.hbm %s3, %s512
          %s514 = sshll.u32 %s504, 4
          %s515 = int_to_ptr.vmem [resolvable:$true] %s514
          %520 = dma.vmem_to_hbm [thread:$0]  %s515, 256, %s513, %s501, 128, 128, 8
        $region44: #{tpu_custom_call.1} parent=31 // pred_fallthru
          _
      $region32: #{tpu_custom_call.1} parent=5 // pred_fallthru
        _
      %p521 = scmp.le.s32.totalorder 2, %s16
      // Predicated region
      $region45: #{tpu_custom_call.1} parent=5 // pred_check
        %p522 = pneg %p521
      $region46: #{tpu_custom_call.1} parent=5 // pred_check_branch
        %524 = sbr.rel (%p522) target = $region48
      $region47: #{tpu_custom_call.1} parent=5 // pred_region
        %s525 = ssub.s32 %s16, 2
        // Predicated region
        $region49: #{tpu_custom_call.1} parent=47 // pred_check
          %p526 = pneg %p113
        $region50: #{tpu_custom_call.1} parent=47 // pred_check_branch
          %528 = sbr.rel (%p526) target = $region52
        $region51: #{tpu_custom_call.1} parent=47 // pred_region
          %s529 = sand.u32 %s98, 1
          %s530 = scalar_lea.sflag [#allocation5], %s529
          %s531 = sand.u32 %s98, 1
          %s532 = smul.addr %s531, 16
          %s533 = scalar_lea.vmem [#allocation8], %s532
          %534 = dma.done %s530, 256
        $region52: #{tpu_custom_call.1} parent=47 // pred_fallthru
          _
      $region48: #{tpu_custom_call.1} parent=5 // pred_fallthru
        _
    $region6: #{tpu_custom_call.1} parent=1 // loop_footer
      %s20 = sadd.s32 1, %s16
    $region7: #{tpu_custom_call.1} parent=1 // loop_footer_branch
      %15 = sbr.rel target = $region3
    $region8: #{tpu_custom_call.1} parent=1 // loop_exit
      _
    %535 = vsyncpa [#allocation4], 1
    %s536 = scalar_lea.sflag [#allocation4], 1
    %537 = vsyncpa %s536, 1
    %538 = vsyncpa [#allocation7], 1
    %539 = vsyncpa [#allocation5], 1
    %s540 = scalar_lea.sflag [#allocation5], 1
    %541 = vsyncpa %s540, 1

</llo_original>
